<compile_context>
chip_gen: v6e
topology: v6e:2x2x1
jax: 0.10.0
libtpu: 0.0.40
codegen_flags: <defaults>
</compile_context>

<pallas_src>
import functools

import jax
import jax.numpy as jnp
import numpy as np
from jax.experimental import pallas as pl
from jax.experimental.pallas import tpu as pltpu


def _focal_loss_kernel(logits_ref, targets_ref, cw_ref, out_ref, *,
                       alpha, gamma, tiles_per, n_valid, inv_n):
    p = pl.program_id(0)          # megacore partition (parallel)
    i = pl.program_id(1)          # sample-tile within partition (arbitrary)

    @pl.when(i == 0)
    def _():
        out_ref[...] = jnp.zeros_like(out_ref)

    x = logits_ref[...].astype(jnp.float32)        # (C, TILE_N) logits, f32 compute
    tgt = targets_ref[...]                         # (1, TILE_N) int32 labels
    cw = cw_ref[...].astype(jnp.float32)           # (C, 1)     per-class weights

    c, tile_n = x.shape

    # log-softmax over the class axis (sublanes, axis 0); samples stay lane-dense.
    m = jnp.max(x, axis=0, keepdims=True)                       # (1, TILE_N)
    z = x - m                                                   # (C, TILE_N)
    lse = jnp.log(jnp.sum(jnp.exp(z), axis=0, keepdims=True))   # (1, TILE_N)

    # In-kernel gather of z[target] / w[target]: (C,1) iota broadcast vs targets.
    class_ids = jax.lax.broadcasted_iota(jnp.int32, (c, 1), 0)  # (C, 1)
    onehot = class_ids == tgt                                   # (C, TILE_N) bool

    picked_z = jnp.sum(jnp.where(onehot, z, 0.0), axis=0, keepdims=True)   # (1, TILE_N)
    sample_w = jnp.sum(jnp.where(onehot, cw, 0.0), axis=0, keepdims=True)  # (1, TILE_N)

    picked_logp = picked_z - lse                   # == log_softmax(x)[target]
    ce = -sample_w * picked_logp                   # (1, TILE_N)
    pt = jnp.exp(-ce)
    one_minus_pt = 1.0 - pt

    g_int = int(gamma)
    if float(gamma) == g_int and g_int >= 0:
        # integer gamma (default 2): VALU multiply chain, gamma-1 multiplies.
        if g_int == 0:
            mod = jnp.ones_like(one_minus_pt)
        else:
            mod = one_minus_pt
            for _ in range(g_int - 1):
                mod = mod * one_minus_pt
    else:
        # clamp so a slightly-negative 1-pt (f32 rounding) can't produce NaN.
        mod = jnp.power(jnp.maximum(one_minus_pt, 0.0), gamma)

    focal = alpha * mod * ce                       # (1, TILE_N)

    # Mask padded sample columns (N rounded up to a multiple of the tile size).
    col0 = (p * tiles_per + i) * tile_n
    cols = col0 + jax.lax.broadcasted_iota(jnp.int32, (1, tile_n), 1)
    focal = jnp.where(cols < n_valid, focal, 0.0)

    # Per-partition partial sum accumulated in the resident (1,1) output block.
    out_ref[...] += jnp.sum(focal, axis=(0, 1), keepdims=True)

    @pl.when(i == pl.num_programs(1) - 1)
    def _():
        out_ref[...] *= inv_n


def focal_loss(logits, targets, *, alpha=1.0, gamma=2.0, class_weights=None,
               block_cols=None):
    """Pallas TPU implementation of FocalLoss.forward.

    logits:  (N, C) float array (bf16 or f32).
    targets: (N,) integer labels.
    Returns a scalar float32.
    """
    n, c = logits.shape

    # Lane-dense presentation: classes -> sublanes, samples -> lanes.
    logits_t = jnp.transpose(logits)                                  # (C, N)
    targets_r = jnp.asarray(targets).astype(jnp.int32).reshape(1, n)  # targets.long()
    if class_weights is None:
        cw = jnp.ones((c, 1), dtype=jnp.float32)
    else:
        cw = jnp.asarray(class_weights, dtype=jnp.float32).reshape(c, 1)

    # Sample-tile sized from a ~1 MiB logits-block budget (multiple of 128 lanes).
    itemsize = jnp.dtype(logits.dtype).itemsize
    if block_cols is None:
        target_block_bytes = 1 << 20
        block_cols = (target_block_bytes // (c * itemsize)) // 128 * 128
    tile_n = int(max(128, min(int(block_cols), pl.cdiv(n, 128) * 128)))

    n_tiles = pl.cdiv(n, tile_n)
    num_parallel = 2 if n_tiles >= 2 else 1          # feed both TCs on v7x
    tiles_per = pl.cdiv(n_tiles, num_parallel)
    n_pad = num_parallel * tiles_per * tile_n
    if n_pad != n:
        logits_t = jnp.pad(logits_t, ((0, 0), (0, n_pad - n)))
        targets_r = jnp.pad(targets_r, ((0, 0), (0, n_pad - n)))

    kernel = functools.partial(
        _focal_loss_kernel,
        alpha=float(alpha), gamma=float(gamma),
        tiles_per=int(tiles_per), n_valid=n, inv_n=1.0 / float(n))

    is_int_gamma = float(gamma) == int(gamma) and int(gamma) >= 0
    cost = pl.CostEstimate(
        flops=10 * n * c + 16 * n,
        transcendentals=n * c + 2 * n + (0 if is_int_gamma else n),
        bytes_accessed=n * c * itemsize + n * 4 + c * 4 + num_parallel * 4)

    out = pl.pallas_call(
        kernel,
        out_shape=jax.ShapeDtypeStruct((num_parallel, 1), jnp.float32),
        grid_spec=pltpu.PrefetchScalarGridSpec(
            num_scalar_prefetch=0,
            grid=(num_parallel, tiles_per),
            in_specs=[
                pl.BlockSpec((c, tile_n), lambda p, i: (0, p * tiles_per + i)),
                pl.BlockSpec((1, tile_n), lambda p, i: (0, p * tiles_per + i)),
                pl.BlockSpec((c, 1), lambda p, i: (0, 0)),        # resident weights
            ],
            out_specs=pl.BlockSpec((1, 1), lambda p, i: (p, 0)),  # per-partition sum
        ),
        compiler_params=pltpu.CompilerParams(
            dimension_semantics=("parallel", "arbitrary")),
        cost_estimate=cost,
    )(logits_t, targets_r, cw)

    return jnp.sum(out)   # reduce the (num_parallel,) partials in plain JAX


def focal_loss_ref(logits, targets, *, alpha=1.0, gamma=2.0, class_weights=None):
    """Pure-JAX reference mirroring the PyTorch module."""
    n, c = logits.shape
    logp = jax.nn.log_softmax(logits.astype(jnp.float32), axis=-1)
    picked = jnp.take_along_axis(logp, targets[:, None].astype(jnp.int32), axis=-1)[:, 0]
    if class_weights is None:
        w = jnp.ones((c,), jnp.float32)
    else:
        w = jnp.asarray(class_weights, jnp.float32)
    ce = -w[targets] * picked
    pt = jnp.exp(-ce)
    return jnp.mean(alpha * (1.0 - pt) ** gamma * ce)


if __name__ == "__main__":
    key = jax.random.PRNGKey(0)
    k_logits, k_targets, k_logits2, k_targets2 = jax.random.split(key, 4)

    # Small EyePACS-like shapes: batch=8, 5 DR severity classes.
    N, C = 8, 5
    logits = jax.random.normal(k_logits, (N, C), dtype=jnp.float32)
    targets = jax.random.randint(k_targets, (N,), 0, C, dtype=jnp.int32)

    # 1) Module defaults: alpha=1, gamma=2, class_weights=None.
    loss = jax.block_until_ready(focal_loss(logits, targets))
    ref = focal_loss_ref(logits, targets)
    np.testing.assert_allclose(np.asarray(loss), np.asarray(ref), rtol=1e-5, atol=1e-6)

    # 2) With class weights (covers the weighted-CE path).
    cw = jnp.array([1.0, 2.0, 0.5, 1.5, 3.0], dtype=jnp.float32)
    loss_w = jax.block_until_ready(
        focal_loss(logits, targets, alpha=0.75, gamma=2.0, class_weights=cw))
    ref_w = focal_loss_ref(logits, targets, alpha=0.75, gamma=2.0, class_weights=cw)
    np.testing.assert_allclose(np.asarray(loss_w), np.asarray(ref_w), rtol=1e-5, atol=1e-6)

    # 3) Non-integer gamma (covers the clamped pow path).
    loss_g = jax.block_until_ready(focal_loss(logits, targets, gamma=1.5))
    ref_g = focal_loss_ref(logits, targets, gamma=1.5)
    np.testing.assert_allclose(np.asarray(loss_g), np.asarray(ref_g), rtol=1e-5, atol=1e-6)

    # 4) Multi-tile + megacore-partition + padding path (small block to force it).
    N2 = 1000
    logits2 = jax.random.normal(k_logits2, (N2, C), dtype=jnp.float32)
    targets2 = jax.random.randint(k_targets2, (N2,), 0, C, dtype=jnp.int32)
    loss_big = jax.block_until_ready(focal_loss(logits2, targets2, block_cols=256))
    ref_big = focal_loss_ref(logits2, targets2)
    np.testing.assert_allclose(np.asarray(loss_big), np.asarray(ref_big),
                               rtol=1e-4, atol=1e-5)

    print("KERNEL_OK")
</pallas_src>

<mosaic_0001>
module attributes {stable_mosaic.version = 11 : i64} {
  func.func @_focal_loss_kernel(%arg0: i32, %arg1: i32, %arg2: memref<5x128xf32, #tpu.memory_space<vmem>>, %arg3: memref<1x128xi32, #tpu.memory_space<vmem>>, %arg4: memref<5x1xf32, #tpu.memory_space<vmem>>, %arg5: memref<1x1xf32, #tpu.memory_space<vmem>>) attributes {dimension_semantics = [#tpu.dimension_semantics<parallel>, #tpu.dimension_semantics<arbitrary>], iteration_bounds = array<i64: 1, 1>, scalar_prefetch = 0 : i64, scratch_operands = 0 : i64, tpu.core_type = #tpu.core_type<tc>, window_params = [{transform_indices = @transform_0, window_bounds = array<i64: 5, 128>}, {transform_indices = @transform_1, window_bounds = array<i64: 1, 128>}, {pipeline_mode = #tpu.pipeline_mode<synchronous>, transform_indices = @transform_2, window_bounds = array<i64: 5, 1>}, {transform_indices = @transform_3, window_bounds = array<i64: 1, 1>}]} {
    %c0_i32 = arith.constant 0 : i32
    %0 = arith.cmpi eq, %arg1, %c0_i32 : i32
    %1 = arith.extui %0 : i1 to i32
    %c0_i32_0 = arith.constant 0 : i32
    %2 = arith.cmpi ne, %1, %c0_i32_0 : i32
    scf.if %2 {
      %cst_23 = arith.constant 0.000000e+00 : f32
      %62 = vector.broadcast %cst_23 : f32 to vector<1x1xf32>
      %c0_24 = arith.constant 0 : index
      %c0_25 = arith.constant 0 : index
      %63 = vector.load %arg5[%c0_24, %c0_25] : memref<1x1xf32, #tpu.memory_space<vmem>>, vector<1x1xf32>
      tpu.vector_store %arg5[%c0_24, %c0_25], %62 {strides = array<i32>} : memref<1x1xf32, #tpu.memory_space<vmem>>, vector<1x1xf32>,
    } else {
    }
    %c0 = arith.constant 0 : index
    %c0_1 = arith.constant 0 : index
    %3 = vector.load %arg2[%c0, %c0_1] : memref<5x128xf32, #tpu.memory_space<vmem>>, vector<5x128xf32>
    %c0_2 = arith.constant 0 : index
    %c0_3 = arith.constant 0 : index
    %4 = vector.load %arg3[%c0_2, %c0_3] : memref<1x128xi32, #tpu.memory_space<vmem>>, vector<1x128xi32>
    %c0_4 = arith.constant 0 : index
    %c0_5 = arith.constant 0 : index
    %5 = vector.load %arg4[%c0_4, %c0_5] : memref<5x1xf32, #tpu.memory_space<vmem>>, vector<5x1xf32>
    %cst = arith.constant dense<0xFF800000> : vector<128xf32>
    %6 = vector.multi_reduction <maximumf>, %3, %cst [0] : vector<5x128xf32> to vector<128xf32>
    %7 = vector.shape_cast %6 : vector<128xf32> to vector<1x128xf32>
    %8 = vector.broadcast %7 : vector<1x128xf32> to vector<5x128xf32>
    %9 = arith.subf %3, %8 : vector<5x128xf32>
    %10 = math.exp %9 : vector<5x128xf32>
    %cst_6 = arith.constant dense<0.000000e+00> : vector<128xf32>
    %11 = vector.multi_reduction <add>, %10, %cst_6 [0] : vector<5x128xf32> to vector<128xf32>
    %12 = vector.shape_cast %11 : vector<128xf32> to vector<1x128xf32>
    %13 = math.log %12 : vector<1x128xf32>
    %14 = tpu.iota {dimensions = array<i32: 0>} : vector<5x1xi32>
    %15 = vector.broadcast %14 : vector<5x1xi32> to vector<5x128xi32>
    %16 = vector.broadcast %4 : vector<1x128xi32> to vector<5x128xi32>
    %17 = arith.cmpi eq, %15, %16 : vector<5x128xi32>
    %cst_7 = arith.constant 0.000000e+00 : f32
    %18 = vector.broadcast %cst_7 : f32 to vector<5x128xf32>
    %19 = arith.select %17, %9, %18 : vector<5x128xi1>, vector<5x128xf32>
    %cst_8 = arith.constant dense<0.000000e+00> : vector<128xf32>
    %20 = vector.multi_reduction <add>, %19, %cst_8 [0] : vector<5x128xf32> to vector<128xf32>
    %21 = vector.shape_cast %20 : vector<128xf32> to vector<1x128xf32>
    %cst_9 = arith.constant 0.000000e+00 : f32
    %22 = vector.shape_cast %5 : vector<5x1xf32> to vector<5x1xf32>
    %23 = vector.broadcast %22 : vector<5x1xf32> to vector<5x128xf32>
    %24 = vector.broadcast %cst_9 : f32 to vector<5x128xf32>
    %25 = arith.select %17, %23, %24 : vector<5x128xi1>, vector<5x128xf32>
    %cst_10 = arith.constant dense<0.000000e+00> : vector<128xf32>
    %26 = vector.multi_reduction <add>, %25, %cst_10 [0] : vector<5x128xf32> to vector<128xf32>
    %27 = vector.shape_cast %26 : vector<128xf32> to vector<1x128xf32>
    %28 = arith.subf %21, %13 : vector<1x128xf32>
    %cst_11 = arith.constant 0.000000e+00 : f32
    %29 = vector.broadcast %cst_11 : f32 to vector<1x128xf32>
    %30 = arith.subf %29, %27 : vector<1x128xf32>
    %31 = arith.mulf %30, %28 : vector<1x128xf32>
    %cst_12 = arith.constant 0.000000e+00 : f32
    %32 = vector.broadcast %cst_12 : f32 to vector<1x128xf32>
    %33 = arith.subf %32, %31 : vector<1x128xf32>
    %34 = math.exp %33 : vector<1x128xf32>
    %cst_13 = arith.constant 1.000000e+00 : f32
    %35 = vector.broadcast %cst_13 : f32 to vector<1x128xf32>
    %36 = arith.subf %35, %34 : vector<1x128xf32>
    %37 = arith.mulf %36, %36 : vector<1x128xf32>
    %cst_14 = arith.constant 1.000000e+00 : f32
    %38 = vector.broadcast %cst_14 : f32 to vector<1x128xf32>
    %39 = arith.mulf %38, %37 : vector<1x128xf32>
    %40 = arith.mulf %39, %31 : vector<1x128xf32>
    %c1_i32 = arith.constant 1 : i32
    %41 = arith.muli %arg0, %c1_i32 : i32
    %42 = arith.addi %41, %arg1 : i32
    %c128_i32 = arith.constant 128 : i32
    %43 = arith.muli %42, %c128_i32 : i32
    %44 = tpu.iota {dimensions = array<i32: 1>} : vector<1x128xi32>
    %45 = vector.broadcast %43 : i32 to vector<1x128xi32>
    %46 = arith.addi %45, %44 : vector<1x128xi32>
    %c8_i32 = arith.constant 8 : i32
    %47 = vector.broadcast %c8_i32 : i32 to vector<1x128xi32>
    %48 = arith.cmpi slt, %46, %47 : vector<1x128xi32>
    %cst_15 = arith.constant 0.000000e+00 : f32
    %49 = vector.broadcast %cst_15 : f32 to vector<1x128xf32>
    %50 = arith.select %48, %40, %49 : vector<1x128xi1>, vector<1x128xf32>
    %c0_16 = arith.constant 0 : index
    %c0_17 = arith.constant 0 : index
    %51 = vector.load %arg5[%c0_16, %c0_17] : memref<1x1xf32, #tpu.memory_space<vmem>>, vector<1x1xf32>
    %52 = vector.shape_cast %50 : vector<1x128xf32> to vector<1x1x128xf32>
    %cst_18 = arith.constant dense<0.000000e+00> : vector<1xf32>
    %53 = vector.multi_reduction <add>, %52, %cst_18 [1, 2] : vector<1x1x128xf32> to vector<1xf32>
    %54 = vector.shape_cast %53 : vector<1xf32> to vector<1x1x1xf32>
    %55 = vector.extract %54[0, 0, 0] : f32 from vector<1x1x1xf32>
    %56 = vector.broadcast %55 : f32 to vector<1x1xf32>
    %57 = arith.addf %51, %56 : vector<1x1xf32>
    %c0_19 = arith.constant 0 : index
    %c0_20 = arith.constant 0 : index
    %58 = vector.load %arg5[%c0_19, %c0_20] : memref<1x1xf32, #tpu.memory_space<vmem>>, vector<1x1xf32>
    tpu.vector_store %arg5[%c0_19, %c0_20], %57 {strides = array<i32>} : memref<1x1xf32, #tpu.memory_space<vmem>>, vector<1x1xf32>,
    %c0_i32_21 = arith.constant 0 : i32
    %59 = arith.cmpi eq, %arg1, %c0_i32_21 : i32
    %60 = arith.extui %59 : i1 to i32
    %c0_i32_22 = arith.constant 0 : i32
    %61 = arith.cmpi ne, %60, %c0_i32_22 : i32
    scf.if %61 {
      %c0_23 = arith.constant 0 : index
      %c0_24 = arith.constant 0 : index
      %62 = vector.load %arg5[%c0_23, %c0_24] : memref<1x1xf32, #tpu.memory_space<vmem>>, vector<1x1xf32>
      %cst_25 = arith.constant 1.250000e-01 : f32
      %63 = vector.broadcast %cst_25 : f32 to vector<1x1xf32>
      %64 = arith.mulf %62, %63 : vector<1x1xf32>
      %c0_26 = arith.constant 0 : index
      %c0_27 = arith.constant 0 : index
      %65 = vector.load %arg5[%c0_26, %c0_27] : memref<1x1xf32, #tpu.memory_space<vmem>>, vector<1x1xf32>
      tpu.vector_store %arg5[%c0_26, %c0_27], %64 {strides = array<i32>} : memref<1x1xf32, #tpu.memory_space<vmem>>, vector<1x1xf32>,
    } else {
    }
    return
  }
  func.func @transform_0(%arg0: i32, %arg1: i32) -> (i32, i32) {
    %c1_i32 = arith.constant 1 : i32
    %0 = arith.muli %arg0, %c1_i32 : i32
    %1 = arith.addi %0, %arg1 : i32
    %c0_i32 = arith.constant 0 : i32
    %c0_i32_0 = arith.constant 0 : i32
    return %c0_i32, %1 : i32, i32
  }
  func.func @transform_1(%arg0: i32, %arg1: i32) -> (i32, i32) {
    %c1_i32 = arith.constant 1 : i32
    %0 = arith.muli %arg0, %c1_i32 : i32
    %1 = arith.addi %0, %arg1 : i32
    %c0_i32 = arith.constant 0 : i32
    %c0_i32_0 = arith.constant 0 : i32
    return %c0_i32, %1 : i32, i32
  }
  func.func @transform_2(%arg0: i32, %arg1: i32) -> (i32, i32) {
    %c0_i32 = arith.constant 0 : i32
    %c0_i32_0 = arith.constant 0 : i32
    %c0_i32_1 = arith.constant 0 : i32
    return %c0_i32, %c0_i32_0 : i32, i32
  }
  func.func @transform_3(%arg0: i32, %arg1: i32) -> (i32, i32) {
    %c0_i32 = arith.constant 0 : i32
    %c0_i32_0 = arith.constant 0 : i32
    return %arg0, %c0_i32 : i32, i32
  }
}

</mosaic_0001>

<llo_original>
// kernel: tpu_custom_call.1
$region0: #{tpu_custom_call.1}
  #allocation0 [shape = 'u32[]', space=smem, size = 0x4, offset = 0x4, fixed_abs, tag = 'smem constant byte address 0x4 - core index']
  #allocation1 [shape = 'u32[144,128]{1,0:T(1,128)}', space=vmem, size = 0x12000, scoped, tag = 'internal scratch']
  %s0 = inlined_call_operand.vmem [shape: f32[5,128], index: 0, kind: input, shape index: {}]
  %s1 = inlined_call_operand.vmem [shape: s32[1,128], index: 1, kind: input, shape index: {}]
  %s2 = inlined_call_operand.vmem [shape: f32[5,1], index: 2, kind: input, shape index: {}]
  %s3 = inlined_call_operand.hbm [shape: f32[1,1], index: 3, kind: output, shape index: {}]
  %s4 = sld [smem:[#allocation0]]
  $region30: #{tpu_custom_call.1} parent=0
    _
  %s6 = ssub.s32 1, %s4
  %s7 = scalar_select 0, %s6, %s4
  $region1: #{tpu_custom_call.1} parent=0
    #allocation2 [shape = 'u8[512]{0}', space=vmem, size = 0x400, scoped, tag = 'output window, operand 0, single buffered']
    #allocation3 [shape = 's32[1]{0}', space=sflag, size = 0x4, scoped, tag = 'scoped memory for tpu_custom_call.1']
    %8 = vsyncpa [#allocation3], 0
    // Predicated region
    $region2: #{tpu_custom_call.1} parent=1 // pred_check
      _
    $region3: #{tpu_custom_call.1} parent=1 // pred_check_branch
      %10 = sbr.rel (0) target = $region5
    $region4: #{tpu_custom_call.1} parent=1 // pred_region
      %s11 = sadd.s32 0, 0
      %p12 = scmp.lt.s32.totalorder %s11, 0
      %s13 = scalar_select %p12, %s11, 0
      %s14 = smul.addr %s13, 8
      %s15 = scalar_lea.vmem %s0, %s14
      %s16 = sadd.s32 0, 0
    $region5: #{tpu_custom_call.1} parent=1 // pred_fallthru
      _
    // Predicated region
    $region6: #{tpu_custom_call.1} parent=1 // pred_check
      _
    $region7: #{tpu_custom_call.1} parent=1 // pred_check_branch
      %18 = sbr.rel (0) target = $region9
    $region8: #{tpu_custom_call.1} parent=1 // pred_region
      %s19 = sadd.s32 0, 0
      %p20 = scmp.lt.s32.totalorder %s19, 0
      %s21 = scalar_select %p20, %s19, 0
      %s22 = scalar_lea.vmem %s1, %s21
      %s23 = sadd.s32 0, 0
    $region9: #{tpu_custom_call.1} parent=1 // pred_fallthru
      _
    // Predicated region
    $region10: #{tpu_custom_call.1} parent=1 // pred_check
      _
    $region11: #{tpu_custom_call.1} parent=1 // pred_check_branch
      %25 = sbr.rel (0) target = $region13
    $region12: #{tpu_custom_call.1} parent=1 // pred_region
      _
    $region13: #{tpu_custom_call.1} parent=1 // pred_fallthru
      _
    %s26 = sadd.s32 0, 0
    %p27 = scmp.lt.s32.totalorder %s26, 0
    %s28 = scalar_select %p27, %s26, 0
    %s29 = smul.addr %s28, 8
    %s30 = scalar_lea.vmem %s0, %s29
    %s31 = sadd.s32 0, 0
    %p32 = scmp.lt.s32.totalorder %s31, 0
    %s33 = scalar_select %p32, %s31, 0
    %s34 = scalar_lea.vmem %s1, %s33
    %s35 = sadd.s32 0, 0
    %p36 = scmp.lt.s32.totalorder %s35, 0
    %s37 = scalar_select %p36, %s35, 0
    %s38 = smul.addr %s37, 8
    %s39 = scalar_lea.vmem %s0, %s38
    %s40 = sadd.s32 0, 0
    %s41 = sadd.s32 0, 0
    %p42 = scmp.lt.s32.totalorder %s41, 0
    %s43 = scalar_select %p42, %s41, 0
    %s44 = scalar_lea.vmem %s1, %s43
    %s45 = sadd.s32 0, 0
    %p46 = scmp.eq.s32.totalorder 0, 0
    // Predicated region
    $region14: #{tpu_custom_call.1} parent=1 // pred_check
      %p47 = pneg %p46
    $region15: #{tpu_custom_call.1} parent=1 // pred_check_branch
      %49 = sbr.rel (%p47) target = $region17
    $region16: #{tpu_custom_call.1} parent=1 // pred_region
      %vm50 = vcmask 0
      %51 = vst.msk [vmem:[#allocation2] sm:$0x1] %vm50, 0.0
    $region17: #{tpu_custom_call.1} parent=1 // pred_fallthru
      _
    %v52 = vld [vmem:[%s39] sm:$0x1f]
    %v53 = vld [vmem:[%s44] sm:$0x1]
    %v54 = vld [vmem:[%s2] sm:$0x1f]
    %vm55 = vcmask 1044480
    %v56 = vsel %vm55, %v52, -inf
    %v57 = vrot.slane %v56, 4
    %v58 = vmax.f32 %v56, %v57
    %v59 = vrot.slane %v58, 2
    %v60 = vmax.f32 %v58, %v59
    %v61 = vrot.slane %v60, 1
    %v62 = vmax.f32 %v60, %v61
    %v63 = vsub.f32 %v52, %v62
    %v64 = vmul.f32 %v63, 1.442695
    %v65 = vpow.pop %v64
    %v66 = vsel %vm55, %v65, 0.0
    %v67 = vrot.slane %v66, 4
    %v68 = vadd.f32 %v66, %v67
    %v69 = vrot.slane %v68, 2
    %v70 = vadd.f32 %v68, %v69
    %v71 = vrot.slane %v70, 1
    %v72 = vadd.f32 %v70, %v71
    %v73 = vlog2.pop %v72
    %v74 = vmul.f32 %v73, 0.6931472
    %v75 = vlaneseq
    %v76 = vshrl.u32 %v75, 7
    %v77 = vlaneseq
    %v78 = vshrl.u32 %v77, 7
    %v79 = vsub.s32 0, %v78
    %v80 = vrot.slane %v53, %v79
    %vm81 = vcmp.eq.s32.totalorder %v76, %v80
    %v82 = vsel %vm81, %v63, 0.0
    %v83 = vsel %vm55, %v82, 0.0
    %v84 = vrot.slane %v83, 4
    %v85 = vadd.f32 %v83, %v84
    %v86 = vrot.slane %v85, 2
    %v87 = vadd.f32 %v85, %v86
    %v88 = vrot.slane %v87, 1
    %v89 = vadd.f32 %v87, %v88
    %91 = vset.pattern.permute.xlu0 0
    %92 = vperm.xlu0 %91, %v54
    %v93 = vpop.permute.xlu0 %92
    %v95 = vsel %vm81, %v93, 0.0
    %v96 = vsel %vm55, %v95, 0.0
    %v97 = vrot.slane %v96, 4
    %v98 = vadd.f32 %v96, %v97
    %v99 = vrot.slane %v98, 2
    %v100 = vadd.f32 %v98, %v99
    %v101 = vrot.slane %v100, 1
    %v102 = vadd.f32 %v100, %v101
    %v103 = vsub.f32 %v89, %v74
    %v104 = vsub.f32 0.0, %v102
    %v105 = vmul.f32 %v104, %v103
    %v106 = vsub.f32 0.0, %v105
    %v107 = vmul.f32 %v106, 1.442695
    %v108 = vpow.pop %v107
    %v109 = vsub.f32 1.0, %v108
    %v110 = vmul.f32 %v109, %v109
    %v111 = vmul.f32 %v110, %v105
    %s112 = sadd.s32 0, 0
    %s113 = smul.u32 %s112, 128
    %v114 = vlaneseq
    %v115 = vand.u32 %v114, 127
    %v116 = vstv %s113
    %v117 = vadd.s32 %v116, %v115
    %vm118 = vcmp.lt.s32.totalorder %v117, 8
    %v119 = vsel %vm118, %v111, 0.0
    %v120 = vld [vmem:[#allocation2] sm:$0x1]
    %vm121 = vcmask 1040384
    %v122 = vsel %vm121, %v119, 0.0
    %123 = vadd.xlane.f32.xlu0 %v122
    %v124 = vpop.xlane.xlu0 %123
    %v125 = vrot.slane %v124, 4
    %v126 = vadd.f32 %v124, %v125
    %v127 = vrot.slane %v126, 2
    %v128 = vadd.f32 %v126, %v127
    %v129 = vrot.slane %v128, 1
    %v130 = vadd.f32 %v128, %v129
    %s131 = vtos %v130
    %v132 = vstv %s131
    %v133 = vadd.f32 %v120, %v132
    %vm134 = vcmask 0
    %135 = vst.msk [vmem:[#allocation2] sm:$0x1] %vm134, %v133
    // Predicated region
    $region18: #{tpu_custom_call.1} parent=1 // pred_check
      %p136 = pneg %p46
    $region19: #{tpu_custom_call.1} parent=1 // pred_check_branch
      %138 = sbr.rel (%p136) target = $region21
    $region20: #{tpu_custom_call.1} parent=1 // pred_region
      %v139 = vld [vmem:[#allocation2] sm:$0x1]
      %v140 = vmul.f32 %v139, 0.125
      %141 = vst.msk [vmem:[#allocation2] sm:$0x1] %vm134, %v140
    $region21: #{tpu_custom_call.1} parent=1 // pred_fallthru
      _
    // Predicated region
    $region22: #{tpu_custom_call.1} parent=1 // pred_check
      _
    $region23: #{tpu_custom_call.1} parent=1 // pred_check_branch
      %143 = sbr.rel (0) target = $region25
    $region24: #{tpu_custom_call.1} parent=1 // pred_region
      %s145 = ssub.s32 16, 16
      %146 = vsyncadd [#allocation3], %s145
      %s148 = sshll.u32 [#allocation2], 4
      %s149 = int_to_ptr.vmem [resolvable:$true] %s148
      %151 = dma.vmem_to_hbm [thread:$0]  %s149, 16, %s3, [#allocation3]
    $region25: #{tpu_custom_call.1} parent=1 // pred_fallthru
      _
    // Predicated region
    $region26: #{tpu_custom_call.1} parent=1 // pred_check
      _
    $region27: #{tpu_custom_call.1} parent=1 // pred_check_branch
      %153 = sbr.rel (0) target = $region29
    $region28: #{tpu_custom_call.1} parent=1 // pred_region
      %154 = dma.done [#allocation3], 16
    $region29: #{tpu_custom_call.1} parent=1 // pred_fallthru
      _
    %155 = vsyncpa [#allocation3], 1

</llo_original>
